<compile_context>
chip_gen: v7x
topology: tpu7x:2x2x1
jax: 0.10.0
libtpu: 0.0.40
codegen_flags: <defaults>
</compile_context>

<pallas_src>
import math
import functools

import jax
import jax.numpy as jnp
from jax import lax
from jax.experimental import pallas as pl
from jax.experimental.pallas import tpu as pltpu


def _round_up(v: int, m: int) -> int:
    return ((v + m - 1) // m) * m


def _vmem_capacity_bytes() -> int:
    """Per-TensorCore VMEM capacity; conservative fallback = v7x (64 MiB)."""
    try:
        info = pltpu.get_tpu_info()
        cap = getattr(info, "vmem_capacity_bytes", None)
        if cap:
            return int(cap)
    except Exception:
        pass
    return 64 * 1024 * 1024


def _block_spec(shape, index_map, buffer_count=None):
    """BlockSpec with an optional pipeline buffer count (graceful fallback)."""
    if buffer_count is not None and hasattr(pl, "Buffered"):
        try:
            return pl.BlockSpec(shape, index_map,
                                pipeline_mode=pl.Buffered(buffer_count))
        except TypeError:
            pass
    return pl.BlockSpec(shape, index_map)


def _make_qkal_kernel(degree: int, in_f_p: int):
    inv_sqrt2 = 1.0 / math.sqrt(2.0)

    def kernel(x_ref, w_ref, o_ref, slab_ref):
        # x_ref:    (TB, in_f_p)              input dtype (f32/bf16)
        # w_ref:    ((degree+1)*in_f_p, TN)   bf16, scales folded, degree-major
        # o_ref:    (TB, TN)                  f32
        # slab_ref: (TB, (degree+1)*in_f_p)   bf16 VMEM scratch (basis slab)
        #
        # The basis depends only on the batch tile; with the out_f axis
        # innermost ("arbitrary") we build it once at j == 0 and reuse it for
        # every output tile of the same batch tile.
        @pl.when(pl.program_id(1) == 0)
        def _build_basis():
            # erf + Legendre recurrence strictly in f32 (VPU/EUP); one bf16
            # cast per degree block at the slab store.
            x = x_ref[...].astype(jnp.float32)
            u = 0.5 * (1.0 + lax.erf(x * inv_sqrt2))
            t = 2.0 * u - 1.0                       # shifted-Legendre argument
            p_prev = jnp.ones_like(t)               # Ptilde_0
            slab_ref[:, 0:in_f_p] = p_prev.astype(jnp.bfloat16)
            if degree >= 1:
                p_cur = t                           # Ptilde_1
                slab_ref[:, in_f_p:2 * in_f_p] = p_cur.astype(jnp.bfloat16)
                for n in range(1, degree):
                    p_next = ((2.0 * n + 1.0) * t * p_cur
                              - float(n) * p_prev) / float(n + 1)
                    slab_ref[:, (n + 1) * in_f_p:(n + 2) * in_f_p] = \
                        p_next.astype(jnp.bfloat16)
                    p_prev, p_cur = p_cur, p_next

        # Single big-K bf16 MXU matmul with f32 accumulation (sqrt(2n+1)
        # scales are already folded into the packed weights).
        o_ref[...] = jnp.dot(
            slab_ref[...], w_ref[...], preferred_element_type=jnp.float32
        ).astype(o_ref.dtype)

    return kernel


def qkal_prepare_weights(poly_w: jax.Array, degree: int) -> jax.Array:
    """Repack poly_w (out_f, in_f*(degree+1)) once at parameter-load time.

    Returns a ((degree+1)*in_f_p, out_f_p) bf16 array with
      w_packed[n*in_f_p + i, o] = sqrt(2n+1) * poly_w[o, i*(degree+1) + n]
    zero-padded to lane-aligned (128-multiple) in_f_p / out_f_p.
    """
    out_f, k = poly_w.shape
    assert k % (degree + 1) == 0
    in_f = k // (degree + 1)
    in_f_p = _round_up(in_f, 128)
    # TODO(synk): round out_f_p to 256 when MXU-bound on v6e/v7x (256x256 MXU).
    out_f_p = _round_up(out_f, 128)

    # (out_f, in_f, D+1) -> (D+1, in_f, out_f), fold sqrt(2n+1) scales.
    w = poly_w.reshape(out_f, in_f, degree + 1).transpose(2, 1, 0)
    scales = jnp.asarray(
        [math.sqrt(2.0 * n + 1.0) for n in range(degree + 1)],
        dtype=poly_w.dtype)
    w = w * scales[:, None, None]
    # Zero-pad feature/output dims (padded rows/cols contribute exactly 0).
    w = jnp.pad(w, ((0, 0), (0, in_f_p - in_f), (0, out_f_p - out_f)))
    return w.reshape((degree + 1) * in_f_p, out_f_p).astype(jnp.bfloat16)


@functools.partial(jax.jit, static_argnames=("degree", "out_f"))
def qkal_forward(x: jax.Array, w_packed: jax.Array,
                 degree: int, out_f: int) -> jax.Array:
    """Pallas QKAL forward.  x: (B, in_f); w_packed from qkal_prepare_weights.
    Returns (B, out_f) f32."""
    B, in_f = x.shape
    K_p, out_f_p = w_packed.shape
    in_f_p = K_p // (degree + 1)
    assert in_f <= in_f_p and out_f <= out_f_p

    capacity = _vmem_capacity_bytes()
    budget = int(0.8 * capacity)

    # ---- out_f tiling: keep the weights resident (single-buffered) when
    # small enough, otherwise stream (K_p, TN) weight tiles along a second
    # grid axis. ----
    w_full_bytes = K_p * out_f_p * 2                 # bf16, single buffer
    if w_full_bytes <= budget // 3:
        TN, w_buffers = out_f_p, 1                   # resident, Buffered(1)
    else:
        TN, w_buffers = 128, 2                       # streamed, double-buffered
        for cand in range(out_f_p, 0, -128):
            if out_f_p % cand == 0 and 2 * K_p * cand * 2 <= budget // 3:
                TN = cand
                break
    nj = out_f_p // TN
    # TODO(synk): add a K grid axis with an f32 accumulator for very large
    # in_f*(degree+1) so the per-step slab shrinks from TB*K_p to TB*tk.

    # ---- generation-aware batch tile: derive TB from the true per-row VMEM
    # footprint against this chip's capacity. ----
    x_isz = jnp.dtype(x.dtype).itemsize
    per_row = (2 * in_f_p * x_isz        # x tile, double-buffered
               + 2 * TN * 4              # out tile, double-buffered
               + K_p * 2                 # bf16 basis slab scratch (1x)
               + 5 * in_f_p * 4)         # live f32 temporaries
    fixed = w_buffers * K_p * TN * 2 + (1 << 20)     # weights + headroom

    tb_cap = _round_up(B, 8)
    TB = 8
    for cand in (1024, 512, 256, 128, 64, 32, 16, 8):
        if cand <= tb_cap and fixed + cand * per_row <= budget:
            TB = cand
            break
    # v7x megacore: ensure the "parallel" batch axis has >= 2 steps so both
    # TensorCores get work (when the batch allows it).
    while _round_up(B, TB) // TB < 2 and TB > 8:
        TB //= 2
    B_p = _round_up(B, TB)
    nb = B_p // TB

    # ---- avoid wrapper-side HBM copies when shapes already align ----
    if B_p == B and in_f_p == in_f:
        x_p = x                                   # stream at native dtype
    else:
        # Padded feature columns hit zero weight rows -> contribute nothing.
        # TODO(synk): masked last-tile stores would avoid the batch pad too.
        x_p = jnp.pad(x, ((0, B_p - B), (0, in_f_p - in_f)))

    est = fixed + TB * per_row
    vmem_limit = int(min(max(int(1.3 * est), 32 * 1024 * 1024),
                         int(0.95 * capacity)))

    cost = pl.CostEstimate(
        flops=2 * B_p * K_p * out_f_p,
        transcendentals=B_p * in_f_p,
        bytes_accessed=(B_p * in_f_p * x_isz
                        + K_p * out_f_p * 2
                        + B_p * out_f_p * 4),
    )

    kernel = _make_qkal_kernel(degree, in_f_p)

    w_spec = _block_spec((K_p, TN), lambda i, j: (0, j),
                         buffer_count=1 if nj == 1 else None)

    out_p = pl.pallas_call(
        kernel,
        out_shape=jax.ShapeDtypeStruct((B_p, out_f_p), jnp.float32),
        grid=(nb, nj),
        in_specs=[
            pl.BlockSpec((TB, in_f_p), lambda i, j: (i, 0)),
            w_spec,
        ],
        out_specs=pl.BlockSpec((TB, TN), lambda i, j: (i, j)),
        scratch_shapes=[pltpu.VMEM((TB, K_p), jnp.bfloat16)],
        compiler_params=pltpu.CompilerParams(
            dimension_semantics=("parallel", "arbitrary"),
            vmem_limit_bytes=vmem_limit),
        cost_estimate=cost,
    )(x_p, w_packed)

    if B_p == B and out_f_p == out_f:
        return out_p
    return out_p[:B, :out_f]


def qkal_reference(x, poly_w, degree):
    """Pure-JAX f32 reference mirroring the PyTorch forward."""
    u = 0.5 * (1.0 + lax.erf(x / math.sqrt(2.0)))
    t = 2.0 * u - 1.0
    polys = [jnp.ones_like(u)]
    if degree >= 1:
        polys.append(t)
    for n in range(1, degree):
        polys.append(((2 * n + 1) * t * polys[n] - n * polys[n - 1]) / (n + 1))
    scaled = [math.sqrt(2 * n + 1) * polys[n] for n in range(degree + 1)]
    P = jnp.stack(scaled, axis=-1)                 # (B, in_f, degree+1)
    P_flat = P.reshape(x.shape[0], -1)             # (B, in_f*(degree+1))
    return P_flat @ poly_w.T


if __name__ == "__main__":
    B, in_f, out_f, degree = 8, 16, 8, 3

    key = jax.random.PRNGKey(0)
    kx, kw = jax.random.split(key)

    x = jax.random.normal(kx, (B, in_f), dtype=jnp.float32)

    # kaiming_uniform_(a=sqrt(5)) on (out_f, in_f*(degree+1)):
    # bound = sqrt(6 / ((1 + a^2) * fan_in)) = 1 / sqrt(fan_in)
    fan_in = in_f * (degree + 1)
    bound = 1.0 / math.sqrt(fan_in)
    poly_w = jax.random.uniform(
        kw, (out_f, fan_in), dtype=jnp.float32, minval=-bound, maxval=bound)

    # Weight repack happens once (outside the per-call jit path).
    w_packed = qkal_prepare_weights(poly_w, degree)

    out = qkal_forward(x, w_packed, degree=degree, out_f=out_f)
    out = jax.block_until_ready(out)

    ref = qkal_reference(x, poly_w, degree)
    assert out.shape == (B, out_f)
    # bf16 MXU inputs (f32 accumulation) -> looser tolerance than pure f32.
    max_err = float(jnp.max(jnp.abs(out - ref)))
    assert jnp.allclose(out, ref, atol=5e-2, rtol=5e-2), f"max err {max_err}"

    print("KERNEL_OK")
</pallas_src>

<mosaic_0001>
module attributes {stable_mosaic.version = 11 : i64} {
  func.func @kernel(%arg0: i32, %arg1: i32, %arg2: memref<8x128xf32, #tpu.memory_space<vmem>>, %arg3: memref<512x128xbf16, #tpu.memory_space<vmem>>, %arg4: memref<8x128xf32, #tpu.memory_space<vmem>>, %arg5: memref<8x512xbf16, #tpu.memory_space<vmem>>) attributes {dimension_semantics = [#tpu.dimension_semantics<parallel>, #tpu.dimension_semantics<arbitrary>], iteration_bounds = array<i64: 1, 1>, scalar_prefetch = 0 : i64, scratch_operands = 1 : i64, tpu.core_type = #tpu.core_type<tc>, window_params = [{transform_indices = @transform_0, window_bounds = array<i64: 8, 128>}, {pipeline_mode = #tpu.pipeline_mode<synchronous>, transform_indices = @transform_1, window_bounds = array<i64: 512, 128>}, {transform_indices = @transform_2, window_bounds = array<i64: 8, 128>}]} {
    %c0_i32 = arith.constant 0 : i32
    %0 = arith.cmpi eq, %arg1, %c0_i32 : i32
    %1 = arith.extui %0 : i1 to i32
    %c0_i32_0 = arith.constant 0 : i32
    %2 = arith.cmpi ne, %1, %c0_i32_0 : i32
    scf.if %2 {
      %c0_6 = arith.constant 0 : index
      %c0_7 = arith.constant 0 : index
      %7 = vector.load %arg2[%c0_6, %c0_7] : memref<8x128xf32, #tpu.memory_space<vmem>>, vector<8x128xf32>
      %cst_8 = arith.constant 0.707106769 : f32
      %8 = vector.broadcast %cst_8 : f32 to vector<8x128xf32>
      %9 = arith.mulf %7, %8 : vector<8x128xf32>
      %10 = math.erf %9 : vector<8x128xf32>
      %cst_9 = arith.constant 1.000000e+00 : f32
      %11 = vector.broadcast %cst_9 : f32 to vector<8x128xf32>
      %12 = arith.addf %11, %10 : vector<8x128xf32>
      %cst_10 = arith.constant 5.000000e-01 : f32
      %13 = vector.broadcast %cst_10 : f32 to vector<8x128xf32>
      %14 = arith.mulf %13, %12 : vector<8x128xf32>
      %cst_11 = arith.constant 2.000000e+00 : f32
      %15 = vector.broadcast %cst_11 : f32 to vector<8x128xf32>
      %16 = arith.mulf %15, %14 : vector<8x128xf32>
      %cst_12 = arith.constant 1.000000e+00 : f32
      %17 = vector.broadcast %cst_12 : f32 to vector<8x128xf32>
      %18 = arith.subf %16, %17 : vector<8x128xf32>
      %cst_13 = arith.constant 1.000000e+00 : f32
      %19 = vector.broadcast %cst_13 : f32 to vector<8x128xf32>
      %20 = arith.truncf %19 : vector<8x128xf32> to vector<8x128xbf16>
      %c0_14 = arith.constant 0 : index
      %c0_15 = arith.constant 0 : index
      %21 = vector.load %arg5[%c0_14, %c0_15] : memref<8x512xbf16, #tpu.memory_space<vmem>>, vector<8x128xbf16>
      tpu.vector_store %arg5[%c0_14, %c0_15], %20 {strides = array<i32>} : memref<8x512xbf16, #tpu.memory_space<vmem>>, vector<8x128xbf16>,
      %22 = arith.truncf %18 : vector<8x128xf32> to vector<8x128xbf16>
      %c0_16 = arith.constant 0 : index
      %c128 = arith.constant 128 : index
      %23 = vector.load %arg5[%c0_16, %c128] : memref<8x512xbf16, #tpu.memory_space<vmem>>, vector<8x128xbf16>
      tpu.vector_store %arg5[%c0_16, %c128], %22 {strides = array<i32>} : memref<8x512xbf16, #tpu.memory_space<vmem>>, vector<8x128xbf16>,
      %cst_17 = arith.constant 3.000000e+00 : f32
      %24 = vector.broadcast %cst_17 : f32 to vector<8x128xf32>
      %25 = arith.mulf %24, %18 : vector<8x128xf32>
      %26 = arith.mulf %25, %18 : vector<8x128xf32>
      %cst_18 = arith.constant 1.000000e+00 : f32
      %27 = vector.broadcast %cst_18 : f32 to vector<8x128xf32>
      %28 = arith.mulf %27, %19 : vector<8x128xf32>
      %29 = arith.subf %26, %28 : vector<8x128xf32>
      %cst_19 = arith.constant 2.000000e+00 : f32
      %30 = vector.broadcast %cst_19 : f32 to vector<8x128xf32>
      %31 = arith.divf %29, %30 : vector<8x128xf32>
      %32 = arith.truncf %31 : vector<8x128xf32> to vector<8x128xbf16>
      %c0_20 = arith.constant 0 : index
      %c256 = arith.constant 256 : index
      %33 = vector.load %arg5[%c0_20, %c256] : memref<8x512xbf16, #tpu.memory_space<vmem>>, vector<8x128xbf16>
      tpu.vector_store %arg5[%c0_20, %c256], %32 {strides = array<i32>} : memref<8x512xbf16, #tpu.memory_space<vmem>>, vector<8x128xbf16>,
      %cst_21 = arith.constant 5.000000e+00 : f32
      %34 = vector.broadcast %cst_21 : f32 to vector<8x128xf32>
      %35 = arith.mulf %34, %18 : vector<8x128xf32>
      %36 = arith.mulf %35, %31 : vector<8x128xf32>
      %cst_22 = arith.constant 2.000000e+00 : f32
      %37 = vector.broadcast %cst_22 : f32 to vector<8x128xf32>
      %38 = arith.mulf %37, %18 : vector<8x128xf32>
      %39 = arith.subf %36, %38 : vector<8x128xf32>
      %cst_23 = arith.constant 3.000000e+00 : f32
      %40 = vector.broadcast %cst_23 : f32 to vector<8x128xf32>
      %41 = arith.divf %39, %40 : vector<8x128xf32>
      %42 = arith.truncf %41 : vector<8x128xf32> to vector<8x128xbf16>
      %c0_24 = arith.constant 0 : index
      %c384 = arith.constant 384 : index
      %43 = vector.load %arg5[%c0_24, %c384] : memref<8x512xbf16, #tpu.memory_space<vmem>>, vector<8x128xbf16>
      tpu.vector_store %arg5[%c0_24, %c384], %42 {strides = array<i32>} : memref<8x512xbf16, #tpu.memory_space<vmem>>, vector<8x128xbf16>,
    } else {
    }
    %c0 = arith.constant 0 : index
    %c0_1 = arith.constant 0 : index
    %3 = vector.load %arg5[%c0, %c0_1] : memref<8x512xbf16, #tpu.memory_space<vmem>>, vector<8x512xbf16>
    %c0_2 = arith.constant 0 : index
    %c0_3 = arith.constant 0 : index
    %4 = vector.load %arg3[%c0_2, %c0_3] : memref<512x128xbf16, #tpu.memory_space<vmem>>, vector<512x128xbf16>
    %cst = arith.constant dense<0.000000e+00> : vector<8x128xf32>
    %5 = tpu.matmul %3, %4, %cst {dimension_numbers = #tpu.dot_dimension_numbers<[1], [0], [0], [1], [0, 0, 1, 1], [], []>} : vector<8x512xbf16>, vector<512x128xbf16>, vector<8x128xf32> -> vector<8x128xf32>
    %c0_4 = arith.constant 0 : index
    %c0_5 = arith.constant 0 : index
    %6 = vector.load %arg4[%c0_4, %c0_5] : memref<8x128xf32, #tpu.memory_space<vmem>>, vector<8x128xf32>
    tpu.vector_store %arg4[%c0_4, %c0_5], %5 {strides = array<i32>} : memref<8x128xf32, #tpu.memory_space<vmem>>, vector<8x128xf32>,
    return
  }
  func.func @transform_0(%arg0: i32, %arg1: i32) -> (i32, i32) {
    %c0_i32 = arith.constant 0 : i32
    %c0_i32_0 = arith.constant 0 : i32
    return %arg0, %c0_i32 : i32, i32
  }
  func.func @transform_1(%arg0: i32, %arg1: i32) -> (i32, i32) {
    %c0_i32 = arith.constant 0 : i32
    %c0_i32_0 = arith.constant 0 : i32
    return %c0_i32, %arg1 : i32, i32
  }
  func.func @transform_2(%arg0: i32, %arg1: i32) -> (i32, i32) {
    %c0_i32 = arith.constant 0 : i32
    return %arg0, %arg1 : i32, i32
  }
}

</mosaic_0001>

<llo_original>
// kernel: qkal_forward.1
$region0: #{qkal_forward.1}
  #allocation0 [shape = 'u32[]', space=smem, size = 0x4, offset = 0x4, fixed_abs, tag = 'smem constant byte address 0x4 - core index']
  #allocation1 [shape = 'u32[144,128]{1,0:T(1,128)}', space=vmem, size = 0x12000, scoped, tag = 'internal scratch']
  #allocation2 [shape = 'bf16[8,512]{1,0:T(8,128)(2,1)}', space=vmem, size = 0x2000, scoped, tag = 'scratch operand']
  %s0 = inlined_call_operand.vmem [shape: f32[8,128], index: 0, kind: input, shape index: {}]
  %s1 = inlined_call_operand.hbm [shape: bf16[512,128], index: 1, kind: input, shape index: {}]
  %s2 = inlined_call_operand.hbm [shape: f32[8,128], index: 2, kind: output, shape index: {}]
  %s3 = sld [smem:[#allocation0]]
  $region26: #{qkal_forward.1} parent=0
    _
  %s5 = ssub.s32 1, %s3
  %s6 = scalar_select 0, %s5, %s3
  $region1: #{qkal_forward.1} parent=0
    #allocation3 [shape = 'u8[131072]{0}', space=vmem, size = 0x20000, scoped, tag = 'input window, operand 1, single buffered']
    #allocation4 [shape = 's32[1]{0}', space=sflag, size = 0x4, scoped, tag = 'scoped memory for qkal_forward.1']
    #allocation5 [shape = 's32[1]{0}', space=sflag, size = 0x4, scoped, tag = 'scoped memory for qkal_forward.1']
    #allocation6 [shape = 'u8[4096]{0}', space=vmem, size = 0x1000, scoped, tag = 'output window, operand 0, single buffered']
    %7 = vsyncpa [#allocation4], 0
    %8 = vsyncpa [#allocation5], 0
    // Predicated region
    $region2: #{qkal_forward.1} parent=1 // pred_check
      _
    $region3: #{qkal_forward.1} parent=1 // pred_check_branch
      %10 = sbr.rel (0) target = $region5
    $region4: #{qkal_forward.1} parent=1 // pred_region
      _
    $region5: #{qkal_forward.1} parent=1 // pred_fallthru
      _
    // Predicated region
    $region6: #{qkal_forward.1} parent=1 // pred_check
      _
    $region7: #{qkal_forward.1} parent=1 // pred_check_branch
      %12 = sbr.rel (0) target = $region9
    $region8: #{qkal_forward.1} parent=1 // pred_region
      %s14 = ssub.s32 4096, 4096
      %15 = vsyncadd [#allocation4], %s14
      %s16 = sshll.u32 [#allocation3], 4
      %s17 = int_to_ptr.vmem [resolvable:$true] %s16
      %22 = dma.hbm_to_vmem [thread:$0]  %s1, 4096, %s17, [#allocation4], 64, 64, 4
    $region9: #{qkal_forward.1} parent=1 // pred_fallthru
      _
    // Predicated region
    $region10: #{qkal_forward.1} parent=1 // pred_check
      _
    $region11: #{qkal_forward.1} parent=1 // pred_check_branch
      %24 = sbr.rel (0) target = $region13
    $region12: #{qkal_forward.1} parent=1 // pred_region
      %25 = dma.done [#allocation4], 4096
    $region13: #{qkal_forward.1} parent=1 // pred_fallthru
      _
    %p28 = scmp.eq.s32.totalorder 0, 0
    // Predicated region
    $region14: #{qkal_forward.1} parent=1 // pred_check
      %p29 = pneg %p28
    $region15: #{qkal_forward.1} parent=1 // pred_check_branch
      %31 = sbr.rel (%p29) target = $region17
    $region16: #{qkal_forward.1} parent=1 // pred_region
      %v32 = vld [vmem:[%s0] sm:$0xff]
      %v33 = vmul.f32 %v32, 0.70710677
      %v34 = verf.f32.pop %v33
      %v35 = vadd.f32 %v34, 1.0
      %v36 = vmul.f32 %v35, 0.5
      %v37 = vmul.f32 %v36, 2.0
      %v38 = vsub.f32 %v37, 1.0
      %39 = vst [vmem:[#allocation2] sm:$0xf] 1065369472
      %v40 = vpack.c.bf16 %v38, %v38
      %41 = vst [vmem:[#allocation2 + $0x4] sm:$0xf] %v40
      %v42 = vmul.f32 %v38, 3.0
      %v43 = vmul.f32 %v42, %v38
      %v44 = vsub.f32 %v43, 1.0
      %v45 = vrcp.pop 2.0
      %v46 = vmul.f32 %v44, %v45
      %v47 = vpack.c.bf16 %v46, %v46
      %48 = vst [vmem:[#allocation2 + $0x8] sm:$0xf] %v47
      %v49 = vmul.f32 %v38, 5.0
      %v50 = vmul.f32 %v49, %v46
      %v51 = vmul.f32 %v38, 2.0
      %v52 = vsub.f32 %v50, %v51
      %v53 = vrcp.pop 3.0
      %v54 = vmul.f32 %v52, %v53
      %v55 = vpack.c.bf16 %v54, %v54
      %56 = vst [vmem:[#allocation2 + $0xc] sm:$0xf] %v55
    $region17: #{qkal_forward.1} parent=1 // pred_fallthru
      _
    %v57 = vld [vmem:[#allocation2] sm:$0xff]
    %v58 = vld [vmem:[#allocation2 + $0x8] sm:$0xff]
    %v59 = vld [vmem:[#allocation3] sm:$0xf]
    %v60 = vld [vmem:[#allocation3 + $0x4] sm:$0xf]
    %v61 = vld [vmem:[#allocation3 + $0x8] sm:$0xf]
    %v62 = vld [vmem:[#allocation3 + $0xc] sm:$0xf]
    %v63 = vld [vmem:[#allocation3 + $0x10] sm:$0xf]
    %v64 = vld [vmem:[#allocation3 + $0x14] sm:$0xf]
    %v65 = vld [vmem:[#allocation3 + $0x18] sm:$0xf]
    %v66 = vld [vmem:[#allocation3 + $0x1c] sm:$0xf]
    %v67 = vld [vmem:[#allocation3 + $0x20] sm:$0xf]
    %v68 = vld [vmem:[#allocation3 + $0x24] sm:$0xf]
    %v69 = vld [vmem:[#allocation3 + $0x28] sm:$0xf]
    %v70 = vld [vmem:[#allocation3 + $0x2c] sm:$0xf]
    %v71 = vld [vmem:[#allocation3 + $0x30] sm:$0xf]
    %v72 = vld [vmem:[#allocation3 + $0x34] sm:$0xf]
    %v73 = vld [vmem:[#allocation3 + $0x38] sm:$0xf]
    %v74 = vld [vmem:[#allocation3 + $0x3c] sm:$0xf]
    %v75 = vld [vmem:[#allocation3 + $0x40] sm:$0xf]
    %v76 = vld [vmem:[#allocation3 + $0x44] sm:$0xf]
    %v77 = vld [vmem:[#allocation3 + $0x48] sm:$0xf]
    %v78 = vld [vmem:[#allocation3 + $0x4c] sm:$0xf]
    %v79 = vld [vmem:[#allocation3 + $0x50] sm:$0xf]
    %v80 = vld [vmem:[#allocation3 + $0x54] sm:$0xf]
    %v81 = vld [vmem:[#allocation3 + $0x58] sm:$0xf]
    %v82 = vld [vmem:[#allocation3 + $0x5c] sm:$0xf]
    %v83 = vld [vmem:[#allocation3 + $0x60] sm:$0xf]
    %v84 = vld [vmem:[#allocation3 + $0x64] sm:$0xf]
    %v85 = vld [vmem:[#allocation3 + $0x68] sm:$0xf]
    %v86 = vld [vmem:[#allocation3 + $0x6c] sm:$0xf]
    %v87 = vld [vmem:[#allocation3 + $0x70] sm:$0xf]
    %v88 = vld [vmem:[#allocation3 + $0x74] sm:$0xf]
    %v89 = vld [vmem:[#allocation3 + $0x78] sm:$0xf]
    %v90 = vld [vmem:[#allocation3 + $0x7c] sm:$0xf]
    %v91 = vld [vmem:[#allocation3 + $0x80] sm:$0xf]
    %v92 = vld [vmem:[#allocation3 + $0x84] sm:$0xf]
    %v93 = vld [vmem:[#allocation3 + $0x88] sm:$0xf]
    %v94 = vld [vmem:[#allocation3 + $0x8c] sm:$0xf]
    %v95 = vld [vmem:[#allocation3 + $0x90] sm:$0xf]
    %v96 = vld [vmem:[#allocation3 + $0x94] sm:$0xf]
    %v97 = vld [vmem:[#allocation3 + $0x98] sm:$0xf]
    %v98 = vld [vmem:[#allocation3 + $0x9c] sm:$0xf]
    %v99 = vld [vmem:[#allocation3 + $0xa0] sm:$0xf]
    %v100 = vld [vmem:[#allocation3 + $0xa4] sm:$0xf]
    %v101 = vld [vmem:[#allocation3 + $0xa8] sm:$0xf]
    %v102 = vld [vmem:[#allocation3 + $0xac] sm:$0xf]
    %v103 = vld [vmem:[#allocation3 + $0xb0] sm:$0xf]
    %v104 = vld [vmem:[#allocation3 + $0xb4] sm:$0xf]
    %v105 = vld [vmem:[#allocation3 + $0xb8] sm:$0xf]
    %v106 = vld [vmem:[#allocation3 + $0xbc] sm:$0xf]
    %v107 = vld [vmem:[#allocation3 + $0xc0] sm:$0xf]
    %v108 = vld [vmem:[#allocation3 + $0xc4] sm:$0xf]
    %v109 = vld [vmem:[#allocation3 + $0xc8] sm:$0xf]
    %v110 = vld [vmem:[#allocation3 + $0xcc] sm:$0xf]
    %v111 = vld [vmem:[#allocation3 + $0xd0] sm:$0xf]
    %v112 = vld [vmem:[#allocation3 + $0xd4] sm:$0xf]
    %v113 = vld [vmem:[#allocation3 + $0xd8] sm:$0xf]
    %v114 = vld [vmem:[#allocation3 + $0xdc] sm:$0xf]
    %v115 = vld [vmem:[#allocation3 + $0xe0] sm:$0xf]
    %v116 = vld [vmem:[#allocation3 + $0xe4] sm:$0xf]
    %v117 = vld [vmem:[#allocation3 + $0xe8] sm:$0xf]
    %v118 = vld [vmem:[#allocation3 + $0xec] sm:$0xf]
    %v119 = vld [vmem:[#allocation3 + $0xf0] sm:$0xf]
    %v120 = vld [vmem:[#allocation3 + $0xf4] sm:$0xf]
    %v121 = vld [vmem:[#allocation3 + $0xf8] sm:$0xf]
    %v122 = vld [vmem:[#allocation3 + $0xfc] sm:$0xf]
    %v125 = vunpack.c.l.b16 %v57
    %v126 = vunpack.c.h.b16 %v57
    %v127 = vunpack.c.l.b16 %v58
    %v128 = vunpack.c.h.b16 %v58
    %v129 = vpack.c.b16 %v125, %v125
    %v130 = vpack.c.b16 %v126, %v126
    %v131 = vpack.c.b16 %v127, %v127
    %v132 = vpack.c.b16 %v128, %v128
    %v201 = vunpack.c.l.b16 %v59
    %v202 = vunpack.c.l.b16 %v60
    %v203 = vunpack.c.l.b16 %v61
    %v204 = vunpack.c.l.b16 %v62
    %v205 = vunpack.c.l.b16 %v63
    %v206 = vunpack.c.l.b16 %v64
    %v207 = vunpack.c.l.b16 %v65
    %v208 = vunpack.c.l.b16 %v66
    %v209 = vunpack.c.l.b16 %v67
    %v210 = vunpack.c.l.b16 %v68
    %v211 = vunpack.c.l.b16 %v69
    %v212 = vunpack.c.l.b16 %v70
    %v213 = vunpack.c.l.b16 %v71
    %v214 = vunpack.c.l.b16 %v72
    %v215 = vunpack.c.l.b16 %v73
    %v216 = vunpack.c.l.b16 %v74
    %v217 = vunpack.c.l.b16 %v75
    %v218 = vunpack.c.l.b16 %v76
    %v219 = vunpack.c.l.b16 %v77
    %v220 = vunpack.c.l.b16 %v78
    %v221 = vunpack.c.l.b16 %v79
    %v222 = vunpack.c.l.b16 %v80
    %v223 = vunpack.c.l.b16 %v81
    %v224 = vunpack.c.l.b16 %v82
    %v225 = vunpack.c.l.b16 %v83
    %v226 = vunpack.c.l.b16 %v84
    %v227 = vunpack.c.l.b16 %v85
    %v228 = vunpack.c.l.b16 %v86
    %v229 = vunpack.c.l.b16 %v87
    %v230 = vunpack.c.l.b16 %v88
    %v231 = vunpack.c.l.b16 %v89
    %v232 = vunpack.c.l.b16 %v90
    %v233 = vunpack.c.l.b16 %v91
    %v234 = vunpack.c.l.b16 %v92
    %v235 = vunpack.c.l.b16 %v93
    %v236 = vunpack.c.l.b16 %v94
    %v237 = vunpack.c.l.b16 %v95
    %v238 = vunpack.c.l.b16 %v96
    %v239 = vunpack.c.l.b16 %v97
    %v240 = vunpack.c.l.b16 %v98
    %v241 = vunpack.c.l.b16 %v99
    %v242 = vunpack.c.l.b16 %v100
    %v243 = vunpack.c.l.b16 %v101
    %v244 = vunpack.c.l.b16 %v102
    %v245 = vunpack.c.l.b16 %v103
    %v246 = vunpack.c.l.b16 %v104
    %v247 = vunpack.c.l.b16 %v105
    %v248 = vunpack.c.l.b16 %v106
    %v249 = vunpack.c.l.b16 %v107
    %v250 = vunpack.c.l.b16 %v108
    %v251 = vunpack.c.l.b16 %v109
    %v252 = vunpack.c.l.b16 %v110
    %v253 = vunpack.c.l.b16 %v111
    %v254 = vunpack.c.l.b16 %v112
    %v255 = vunpack.c.l.b16 %v113
    %v256 = vunpack.c.l.b16 %v114
    %v257 = vunpack.c.l.b16 %v115
    %v258 = vunpack.c.l.b16 %v116
    %v259 = vunpack.c.l.b16 %v117
    %v260 = vunpack.c.l.b16 %v118
    %v261 = vunpack.c.l.b16 %v119
    %v262 = vunpack.c.l.b16 %v120
    %v263 = vunpack.c.l.b16 %v121
    %v264 = vunpack.c.l.b16 %v122
    %v265 = vpack.c.b16 %v202, %v201
    %v266 = vpack.c.b16 %v204, %v203
    %v267 = vpack.c.b16 %v206, %v205
    %v268 = vpack.c.b16 %v208, %v207
    %v269 = vpack.c.b16 %v210, %v209
    %v270 = vpack.c.b16 %v212, %v211
    %v271 = vpack.c.b16 %v214, %v213
    %v272 = vpack.c.b16 %v216, %v215
    %v273 = vpack.c.b16 %v218, %v217
    %v274 = vpack.c.b16 %v220, %v219
    %v275 = vpack.c.b16 %v222, %v221
    %v276 = vpack.c.b16 %v224, %v223
    %v277 = vpack.c.b16 %v226, %v225
    %v278 = vpack.c.b16 %v228, %v227
    %v279 = vpack.c.b16 %v230, %v229
    %v280 = vpack.c.b16 %v232, %v231
    %v281 = vpack.c.b16 %v234, %v233
    %v282 = vpack.c.b16 %v236, %v235
    %v283 = vpack.c.b16 %v238, %v237
    %v284 = vpack.c.b16 %v240, %v239
    %v285 = vpack.c.b16 %v242, %v241
    %v286 = vpack.c.b16 %v244, %v243
    %v287 = vpack.c.b16 %v246, %v245
    %v288 = vpack.c.b16 %v248, %v247
    %v289 = vpack.c.b16 %v250, %v249
    %v290 = vpack.c.b16 %v252, %v251
    %v291 = vpack.c.b16 %v254, %v253
    %v292 = vpack.c.b16 %v256, %v255
    %v293 = vpack.c.b16 %v258, %v257
    %v294 = vpack.c.b16 %v260, %v259
    %v295 = vpack.c.b16 %v262, %v261
    %v296 = vpack.c.b16 %v264, %v263
    %329 = vmatprep.subr.bf16.mxu0 0
    %330 = vmatpush1.bf16.msra.mxu0 %v265
    %331 = vmatprep.subr.bf16.mxu0 0
    %332 = vmatpush1.bf16.msra.mxu0 %v266
    %333 = vmatprep.subr.bf16.mxu0 0
    %334 = vmatpush1.bf16.msra.mxu0 %v267
    %335 = vmatprep.subr.bf16.mxu0 0
    %336 = vmatpush1.bf16.msra.mxu0 %v268
    %337 = vmatprep.subr.bf16.mxu0 0
    %338 = vmatpush1.bf16.msra.mxu0 %v269
    %339 = vmatprep.subr.bf16.mxu0 0
    %340 = vmatpush1.bf16.msra.mxu0 %v270
    %341 = vmatprep.subr.bf16.mxu0 0
    %342 = vmatpush1.bf16.msra.mxu0 %v271
    %343 = vmatprep.subr.bf16.mxu0 0
    %344 = vmatpush1.bf16.msra.mxu0 %v272
    %345 = vmatprep.subr.bf16.mxu0 0
    %346 = vmatpush1.bf16.msra.mxu0 %v273
    %347 = vmatprep.subr.bf16.mxu0 0
    %348 = vmatpush1.bf16.msra.mxu0 %v274
    %349 = vmatprep.subr.bf16.mxu0 0
    %350 = vmatpush1.bf16.msra.mxu0 %v275
    %351 = vmatprep.subr.bf16.mxu0 0
    %352 = vmatpush1.bf16.msra.mxu0 %v276
    %353 = vmatprep.subr.bf16.mxu0 0
    %354 = vmatpush1.bf16.msra.mxu0 %v277
    %355 = vmatprep.subr.bf16.mxu0 0
    %356 = vmatpush1.bf16.msra.mxu0 %v278
    %357 = vmatprep.subr.bf16.mxu0 0
    %358 = vmatpush1.bf16.msra.mxu0 %v279
    %359 = vmatprep.subr.bf16.mxu0 0
    %360 = vmatpush1.bf16.msra.mxu0 %v280
    %361 = vmatprep.mubr.bf16.mxu0 %v130
    %362 = vmatmul.mubr.bf16.gmra.mrb[0].mxu0 %v129
    %v363 = vpop.f32.mrb[0].mxu0
    %v364 = vadd.f32 0.0, %v363
    %v365 = vpop.f32.mrb[0].mxu0
    %v366 = vpop.f32.mrb[0].mxu0
    %v367 = vpop.f32.mrb[0].mxu0
    %368 = vdwg.mxu0
    %369 = vmatprep.subr.bf16.mxu0 0
    %370 = vmatpush1.bf16.msra.mxu0 %v281
    %371 = vmatprep.subr.bf16.mxu0 0
    %372 = vmatpush1.bf16.msra.mxu0 %v282
    %373 = vmatprep.subr.bf16.mxu0 0
    %374 = vmatpush1.bf16.msra.mxu0 %v283
    %375 = vmatprep.subr.bf16.mxu0 0
    %376 = vmatpush1.bf16.msra.mxu0 %v284
    %377 = vmatprep.subr.bf16.mxu0 0
    %378 = vmatpush1.bf16.msra.mxu0 %v285
    %379 = vmatprep.subr.bf16.mxu0 0
    %380 = vmatpush1.bf16.msra.mxu0 %v286
    %381 = vmatprep.subr.bf16.mxu0 0
    %382 = vmatpush1.bf16.msra.mxu0 %v287
    %383 = vmatprep.subr.bf16.mxu0 0
    %384 = vmatpush1.bf16.msra.mxu0 %v288
    %385 = vmatprep.subr.bf16.mxu0 0
    %386 = vmatpush1.bf16.msra.mxu0 %v289
    %387 = vmatprep.subr.bf16.mxu0 0
    %388 = vmatpush1.bf16.msra.mxu0 %v290
    %389 = vmatprep.subr.bf16.mxu0 0
    %390 = vmatpush1.bf16.msra.mxu0 %v291
    %391 = vmatprep.subr.bf16.mxu0 0
    %392 = vmatpush1.bf16.msra.mxu0 %v292
    %393 = vmatprep.subr.bf16.mxu0 0
    %394 = vmatpush1.bf16.msra.mxu0 %v293
    %395 = vmatprep.subr.bf16.mxu0 0
    %396 = vmatpush1.bf16.msra.mxu0 %v294
    %397 = vmatprep.subr.bf16.mxu0 0
    %398 = vmatpush1.bf16.msra.mxu0 %v295
    %399 = vmatprep.subr.bf16.mxu0 0
    %400 = vmatpush1.bf16.msra.mxu0 %v296
    %401 = vmatprep.mubr.bf16.mxu0 %v132
    %402 = vmatmul.mubr.bf16.gmra.mrb[0].mxu0 %v131
    %v403 = vpop.f32.mrb[0].mxu0
    %v404 = vadd.f32 %v364, %v403
    %v405 = vpop.f32.mrb[0].mxu0
    %v406 = vpop.f32.mrb[0].mxu0
    %v407 = vpop.f32.mrb[0].mxu0
    %408 = vdwg.mxu0
    %409 = vst [vmem:[#allocation6] sm:$0xff] %v404
    // Predicated region
    $region18: #{qkal_forward.1} parent=1 // pred_check
      _
    $region19: #{qkal_forward.1} parent=1 // pred_check_branch
      %411 = sbr.rel (0) target = $region21
    $region20: #{qkal_forward.1} parent=1 // pred_region
      %s413 = ssub.s32 128, 128
      %414 = vsyncadd [#allocation5], %s413
      %s416 = sshll.u32 [#allocation6], 4
      %s417 = int_to_ptr.vmem [resolvable:$true] %s416
      %419 = dma.vmem_to_hbm [thread:$0]  %s417, 128, %s2, [#allocation5]
    $region21: #{qkal_forward.1} parent=1 // pred_fallthru
      _
    // Predicated region
    $region22: #{qkal_forward.1} parent=1 // pred_check
      _
    $region23: #{qkal_forward.1} parent=1 // pred_check_branch
      %421 = sbr.rel (0) target = $region25
    $region24: #{qkal_forward.1} parent=1 // pred_region
      %422 = dma.done [#allocation5], 128
    $region25: #{qkal_forward.1} parent=1 // pred_fallthru
      _
    %423 = vsyncpa [#allocation4], 1
    %424 = vsyncpa [#allocation5], 1

</llo_original>
